<compile_context>
chip_gen: v7x
topology: tpu7x:2x2x1
jax: 0.10.0
libtpu: 0.0.40
codegen_flags: <defaults>
</compile_context>

<pallas_src>
import functools

import jax
import jax.numpy as jnp
from jax.experimental import pallas as pl
from jax.experimental.pallas import tpu as pltpu

LANES = 128
SUBLANES = 8
ALIGN = SUBLANES * LANES                       # 1024-element vreg granularity

# ~8 MiB of input data streamed per grid step (both operands together):
# f32+f32 -> 8192-row tiles, bf16+bf16 -> 16384 rows, bf16+f32 -> 10920 rows.
# Double-buffered input VMEM stays at ~16 MiB on every chip generation.
TARGET_STEP_BYTES = 8 * 1024 * 1024
# Explicit scoped-VMEM budget: above v5e's 16 MiB default, below v7x's
# 64 MiB physical per-TC ceiling.
MIN_VMEM_LIMIT = 32 * 1024 * 1024
SMALL_INPUT_BYTES = 512 * 1024                 # below this, plain jnp wins
INNER_UNROLL = 8


@functools.lru_cache(maxsize=1)
def _num_parallel_cores():
    """2 on v7x-class chips (two TensorCores behind one device), else 1."""
    try:
        kind = jax.devices()[0].device_kind.lower()
    except Exception:
        return 1
    return 2 if "7" in kind else 1


def _epilogue(tp, sx, st, alpha, beta, gamma, smooth):
    fp = sx - tp                  # sum((1 - t) * x)
    fn = st - tp                  # sum(t * (1 - x))
    tversky = (tp + smooth) / (tp + alpha * fp + beta * fn + smooth)
    return (1.0 - tversky) ** gamma


def _focal_tversky_kernel(x_ref, t_ref, o_ref, *, block_rows, bps, num_blocks,
                          total_rows, has_partial, has_overhang, unroll):
    s = pl.program_id(0)          # split axis (core-parallel on v7x)
    b = pl.program_id(1)          # reduction axis over blocks of this split

    @pl.when(b == 0)
    def _init():
        o_ref[...] = jnp.zeros_like(o_ref)

    logical = s * bps + b         # logical (unclamped) block index

    def _accumulate(masked):
        # Single fused pass: cast + TP/Sx/St accumulation per (8, 128) vreg
        # group, carried in registers (no full-tile f32 temps in VMEM).
        groups = block_rows // SUBLANES

        def body(g, carry):
            tp, sx, st = carry
            i = pl.multiple_of(g * SUBLANES, SUBLANES)
            xg = x_ref[pl.ds(i, SUBLANES), :].astype(jnp.float32)
            tg = t_ref[pl.ds(i, SUBLANES), :].astype(jnp.float32)
            if masked:
                row = (logical * block_rows + i
                       + jax.lax.broadcasted_iota(jnp.int32,
                                                  (SUBLANES, LANES), 0))
                valid = row < total_rows
                xg = jnp.where(valid, xg, 0.0)
                tg = jnp.where(valid, tg, 0.0)
            return tp + xg * tg, sx + xg, st + tg

        zero = jnp.zeros((SUBLANES, LANES), jnp.float32)
        tp, sx, st = jax.lax.fori_loop(0, groups, body, (zero, zero, zero),
                                       unroll=unroll)
        o_ref[0, :, :] += tp
        o_ref[1, :, :] += sx
        o_ref[2, :, :] += st

    if not (has_partial or has_overhang):
        # Common aligned path: mask / branch code compiled out entirely.
        _accumulate(masked=False)
    else:
        last = num_blocks - 1
        if has_partial:
            # Overhang blocks are clamped to `last` by the index_map, so
            # `logical < last` excludes both partial and overhang blocks.
            is_full = (logical < last) if has_overhang else (logical != last)
        else:
            is_full = logical < num_blocks

        @pl.when(is_full)
        def _full_blocks():
            _accumulate(masked=False)

        if has_partial:
            @pl.when(logical == last)
            def _partial_block():
                _accumulate(masked=True)


def binary_focal_tversky_loss(inputs, targets, alpha=0.5, beta=0.5, gamma=1.0,
                              smooth=1.0, *, force_pallas=False):
    """Matches BinaryFocalTverskyLoss.forward(inputs, targets, smooth)."""
    x = jnp.ravel(inputs)         # keep native dtype; cast happens in-kernel
    t = jnp.ravel(targets)
    n = x.shape[0]

    data_bytes = n * (x.dtype.itemsize + t.dtype.itemsize)
    if not force_pallas and data_bytes < SMALL_INPUT_BYTES:
        # Tiny tensors: launch + one grid step dominates; XLA's fused
        # reduction is faster and avoids the padded-reshape plumbing.
        xf = x.astype(jnp.float32)
        tf = t.astype(jnp.float32)
        return _epilogue(jnp.sum(xf * tf), jnp.sum(xf), jnp.sum(tf),
                         alpha, beta, gamma, smooth)

    # Align to (8, 128) vreg granularity.  Typical NCHW tensors are already a
    # multiple of 1024 elements, so this is a free reshape on the common path.
    pad = (-n) % ALIGN
    if pad:                       # rare fallback; zero padding is exact here
        x = jnp.pad(x, (0, pad))
        t = jnp.pad(t, (0, pad))
    rows = (n + pad) // LANES
    x2 = x.reshape(rows, LANES)
    t2 = t.reshape(rows, LANES)

    # Dtype-aware tile: ~TARGET_STEP_BYTES of HBM traffic per grid step.
    bytes_per_row = LANES * (x2.dtype.itemsize + t2.dtype.itemsize)
    block_rows = max(SUBLANES,
                     (TARGET_STEP_BYTES // bytes_per_row) // SUBLANES * SUBLANES)
    block_rows = min(block_rows, rows)
    num_blocks = -(-rows // block_rows)

    # Split the block range across TensorCores only where that is real
    # parallelism (v7x); 1-TC chips keep a single split so no overhang /
    # extra accumulator resets are introduced.
    num_splits = 2 if (_num_parallel_cores() >= 2 and num_blocks >= 2) else 1
    bps = -(-num_blocks // num_splits)
    has_partial = (rows % block_rows) != 0
    has_overhang = num_splits * bps != num_blocks

    # Correctness guard: every block-padding row and clamped duplicate block
    # must be covered by the masked / skipped paths.
    assert num_splits * bps >= num_blocks >= 1
    assert has_overhang == (num_splits * bps > num_blocks)
    assert has_partial == (num_blocks * block_rows > rows)

    unroll = max(1, min(INNER_UNROLL, block_rows // SUBLANES))

    kernel = functools.partial(
        _focal_tversky_kernel,
        block_rows=block_rows, bps=bps, num_blocks=num_blocks,
        total_rows=rows, has_partial=has_partial, has_overhang=has_overhang,
        unroll=unroll)

    def in_map(s, b):
        # Clamp so DMAs of overhang blocks stay in bounds; the kernel skips
        # their contribution using the logical (unclamped) index.
        return (jnp.minimum(s * bps + b, num_blocks - 1), 0)

    in_buffer_bytes = 2 * block_rows * bytes_per_row        # 2x double buffer
    vmem_limit = int(max(MIN_VMEM_LIMIT, in_buffer_bytes + (4 << 20)))

    split_sem = pltpu.CORE_PARALLEL if num_splits > 1 else pltpu.ARBITRARY

    io_bytes = (x2.size * x2.dtype.itemsize + t2.size * t2.dtype.itemsize
                + num_splits * 3 * SUBLANES * LANES * 4)

    partials = pl.pallas_call(
        kernel,
        out_shape=jax.ShapeDtypeStruct((num_splits, 3, SUBLANES, LANES),
                                       jnp.float32),
        grid_spec=pltpu.PrefetchScalarGridSpec(
            num_scalar_prefetch=0,
            grid=(num_splits, bps),
            in_specs=[
                pl.BlockSpec((block_rows, LANES), in_map),
                pl.BlockSpec((block_rows, LANES), in_map),
            ],
            out_specs=pl.BlockSpec((None, 3, SUBLANES, LANES),
                                   lambda s, b: (s, 0, 0, 0)),
        ),
        compiler_params=pltpu.CompilerParams(
            dimension_semantics=(split_sem, pltpu.ARBITRARY),
            vmem_limit_bytes=vmem_limit,
        ),
        cost_estimate=pl.CostEstimate(
            flops=4 * rows * LANES, transcendentals=0,
            bytes_accessed=io_bytes),
    )(x2, t2)

    # Tiny scalar epilogue kept in JAX so split cores never share accumulators.
    tp = jnp.sum(partials[:, 0])
    sx = jnp.sum(partials[:, 1])
    st = jnp.sum(partials[:, 2])
    return _epilogue(tp, sx, st, alpha, beta, gamma, smooth)


def _reference(inputs, targets, alpha=0.5, beta=0.5, gamma=1.0, smooth=1.0):
    x = jnp.ravel(inputs).astype(jnp.float32)
    t = jnp.ravel(targets).astype(jnp.float32)
    tp = jnp.sum(x * t)
    fp = jnp.sum((1.0 - t) * x)
    fn = jnp.sum(t * (1.0 - x))
    tversky = (tp + smooth) / (tp + alpha * fp + beta * fn + smooth)
    return (1.0 - tversky) ** gamma


if __name__ == "__main__":
    key = jax.random.PRNGKey(0)
    k1, k2, k3, k4 = jax.random.split(key, 4)

    # Small NCHW tensors, as produced by a segmentation head (post-sigmoid).
    inputs = jax.nn.sigmoid(jax.random.normal(k1, (2, 4, 16, 16), jnp.float32))
    targets = (jax.random.uniform(k2, (2, 4, 16, 16)) > 0.5).astype(jnp.float32)
    ref = _reference(inputs, targets)

    # 1) Pallas kernel path (forced, single-block grid).
    loss = jax.block_until_ready(
        binary_focal_tversky_loss(inputs, targets, force_pallas=True))
    assert jnp.allclose(loss, ref, atol=1e-5, rtol=1e-5), (loss, ref)

    # 2) Small-input fallback path (default threshold).
    loss_fb = jax.block_until_ready(binary_focal_tversky_loss(inputs, targets))
    assert jnp.allclose(loss_fb, ref, atol=1e-5, rtol=1e-5), (loss_fb, ref)

    # 3) Larger tensor: multi-block grid + partial-last-block masking.
    big_in = jax.nn.sigmoid(jax.random.normal(k3, (8, 8, 160, 224), jnp.float32))
    big_tg = (jax.random.uniform(k4, (8, 8, 160, 224)) > 0.5).astype(jnp.float32)
    loss_big = jax.block_until_ready(
        binary_focal_tversky_loss(big_in, big_tg, alpha=0.3, beta=0.7, gamma=0.75))
    ref_big = _reference(big_in, big_tg, alpha=0.3, beta=0.7, gamma=0.75)
    assert jnp.allclose(loss_big, ref_big, atol=1e-5, rtol=1e-4), (loss_big, ref_big)

    # 4) bf16 inputs exercise the dtype-aware tile sizing and in-kernel cast.
    loss_bf16 = jax.block_until_ready(
        binary_focal_tversky_loss(big_in.astype(jnp.bfloat16), big_tg))
    ref_bf16 = _reference(big_in.astype(jnp.bfloat16), big_tg)
    assert jnp.allclose(loss_bf16, ref_bf16, atol=1e-4, rtol=1e-4), (loss_bf16, ref_bf16)

    print("KERNEL_OK")
</pallas_src>

<mosaic_0001>
module attributes {stable_mosaic.version = 11 : i64} {
  func.func @_focal_tversky_kernel(%arg0: i32, %arg1: i32, %arg2: memref<16x128xf32, #tpu.memory_space<vmem>>, %arg3: memref<16x128xf32, #tpu.memory_space<vmem>>, %arg4: memref<1x3x8x128xf32, #tpu.memory_space<vmem>>) attributes {dimension_semantics = [#tpu.dimension_semantics<arbitrary>, #tpu.dimension_semantics<arbitrary>], iteration_bounds = array<i64: 1, 1>, scalar_prefetch = 0 : i64, scratch_operands = 0 : i64, tpu.core_type = #tpu.core_type<tc>, window_params = [{transform_indices = @transform_0, window_bounds = array<i64: 16, 128>}, {transform_indices = @transform_1, window_bounds = array<i64: 16, 128>}, {transform_indices = @transform_2, window_bounds = array<i64: 1, 3, 8, 128>}]} {
    %c0_i32 = arith.constant 0 : i32
    %0 = arith.cmpi eq, %arg1, %c0_i32 : i32
    %1 = arith.extui %0 : i1 to i32
    %c0_i32_0 = arith.constant 0 : i32
    %2 = arith.cmpi ne, %1, %c0_i32_0 : i32
    scf.if %2 {
      %cst_28 = arith.constant 0.000000e+00 : f32
      %42 = vector.broadcast %cst_28 : f32 to vector<3x8x128xf32>
      %c0_29 = arith.constant 0 : index
      %c0_30 = arith.constant 0 : index
      %c0_31 = arith.constant 0 : index
      %c0_32 = arith.constant 0 : index
      %43 = vector.load %arg4[%c0_29, %c0_30, %c0_31, %c0_32] : memref<1x3x8x128xf32, #tpu.memory_space<vmem>>, vector<1x3x8x128xf32>
      %44 = vector.shape_cast %43 : vector<1x3x8x128xf32> to vector<3x8x128xf32>
      %45 = vector.shape_cast %42 : vector<3x8x128xf32> to vector<1x3x8x128xf32>
      tpu.vector_store %arg4[%c0_29, %c0_30, %c0_31, %c0_32], %45 {strides = array<i32>} : memref<1x3x8x128xf32, #tpu.memory_space<vmem>>, vector<1x3x8x128xf32>,
    } else {
    }
    %cst = arith.constant 0.000000e+00 : f32
    %3 = vector.broadcast %cst : f32 to vector<8x128xf32>
    %c0_i32_1 = arith.constant 0 : i32
    %c8_i32 = arith.constant 8 : i32
    %4 = arith.muli %c0_i32_1, %c8_i32 : i32
    %5 = tpu.assume_multiple %4, 8 : i32
    %6 = arith.index_cast %5 : i32 to index
    %c0 = arith.constant 0 : index
    %7 = vector.load %arg2[%6, %c0] : memref<16x128xf32, #tpu.memory_space<vmem>>, vector<8x128xf32>
    %8 = arith.index_cast %5 : i32 to index
    %c0_2 = arith.constant 0 : index
    %9 = vector.load %arg3[%8, %c0_2] : memref<16x128xf32, #tpu.memory_space<vmem>>, vector<8x128xf32>
    %10 = arith.mulf %7, %9 : vector<8x128xf32>
    %11 = arith.addf %3, %10 : vector<8x128xf32>
    %12 = arith.addf %3, %7 : vector<8x128xf32>
    %13 = arith.addf %3, %9 : vector<8x128xf32>
    %c1_i32 = arith.constant 1 : i32
    %c8_i32_3 = arith.constant 8 : i32
    %14 = arith.muli %c1_i32, %c8_i32_3 : i32
    %15 = tpu.assume_multiple %14, 8 : i32
    %16 = arith.index_cast %15 : i32 to index
    %c0_4 = arith.constant 0 : index
    %17 = vector.load %arg2[%16, %c0_4] : memref<16x128xf32, #tpu.memory_space<vmem>>, vector<8x128xf32>
    %18 = arith.index_cast %15 : i32 to index
    %c0_5 = arith.constant 0 : index
    %19 = vector.load %arg3[%18, %c0_5] : memref<16x128xf32, #tpu.memory_space<vmem>>, vector<8x128xf32>
    %20 = arith.mulf %17, %19 : vector<8x128xf32>
    %21 = arith.addf %11, %20 : vector<8x128xf32>
    %22 = arith.addf %12, %17 : vector<8x128xf32>
    %23 = arith.addf %13, %19 : vector<8x128xf32>
    %c2_i32 = arith.constant 2 : i32
    %c0_6 = arith.constant 0 : index
    %c0_7 = arith.constant 0 : index
    %c0_8 = arith.constant 0 : index
    %c0_9 = arith.constant 0 : index
    %24 = vector.load %arg4[%c0_6, %c0_7, %c0_8, %c0_9] : memref<1x3x8x128xf32, #tpu.memory_space<vmem>>, vector<1x1x8x128xf32>
    %25 = vector.shape_cast %24 : vector<1x1x8x128xf32> to vector<8x128xf32>
    %26 = arith.addf %25, %21 : vector<8x128xf32>
    %c0_10 = arith.constant 0 : index
    %c0_11 = arith.constant 0 : index
    %c0_12 = arith.constant 0 : index
    %c0_13 = arith.constant 0 : index
    %27 = vector.load %arg4[%c0_10, %c0_11, %c0_12, %c0_13] : memref<1x3x8x128xf32, #tpu.memory_space<vmem>>, vector<1x1x8x128xf32>
    %28 = vector.shape_cast %27 : vector<1x1x8x128xf32> to vector<8x128xf32>
    %29 = vector.shape_cast %26 : vector<8x128xf32> to vector<1x1x8x128xf32>
    tpu.vector_store %arg4[%c0_10, %c0_11, %c0_12, %c0_13], %29 {strides = array<i32>} : memref<1x3x8x128xf32, #tpu.memory_space<vmem>>, vector<1x1x8x128xf32>,
    %c0_14 = arith.constant 0 : index
    %c1 = arith.constant 1 : index
    %c0_15 = arith.constant 0 : index
    %c0_16 = arith.constant 0 : index
    %30 = vector.load %arg4[%c0_14, %c1, %c0_15, %c0_16] : memref<1x3x8x128xf32, #tpu.memory_space<vmem>>, vector<1x1x8x128xf32>
    %31 = vector.shape_cast %30 : vector<1x1x8x128xf32> to vector<8x128xf32>
    %32 = arith.addf %31, %22 : vector<8x128xf32>
    %c0_17 = arith.constant 0 : index
    %c1_18 = arith.constant 1 : index
    %c0_19 = arith.constant 0 : index
    %c0_20 = arith.constant 0 : index
    %33 = vector.load %arg4[%c0_17, %c1_18, %c0_19, %c0_20] : memref<1x3x8x128xf32, #tpu.memory_space<vmem>>, vector<1x1x8x128xf32>
    %34 = vector.shape_cast %33 : vector<1x1x8x128xf32> to vector<8x128xf32>
    %35 = vector.shape_cast %32 : vector<8x128xf32> to vector<1x1x8x128xf32>
    tpu.vector_store %arg4[%c0_17, %c1_18, %c0_19, %c0_20], %35 {strides = array<i32>} : memref<1x3x8x128xf32, #tpu.memory_space<vmem>>, vector<1x1x8x128xf32>,
    %c0_21 = arith.constant 0 : index
    %c2 = arith.constant 2 : index
    %c0_22 = arith.constant 0 : index
    %c0_23 = arith.constant 0 : index
    %36 = vector.load %arg4[%c0_21, %c2, %c0_22, %c0_23] : memref<1x3x8x128xf32, #tpu.memory_space<vmem>>, vector<1x1x8x128xf32>
    %37 = vector.shape_cast %36 : vector<1x1x8x128xf32> to vector<8x128xf32>
    %38 = arith.addf %37, %23 : vector<8x128xf32>
    %c0_24 = arith.constant 0 : index
    %c2_25 = arith.constant 2 : index
    %c0_26 = arith.constant 0 : index
    %c0_27 = arith.constant 0 : index
    %39 = vector.load %arg4[%c0_24, %c2_25, %c0_26, %c0_27] : memref<1x3x8x128xf32, #tpu.memory_space<vmem>>, vector<1x1x8x128xf32>
    %40 = vector.shape_cast %39 : vector<1x1x8x128xf32> to vector<8x128xf32>
    %41 = vector.shape_cast %38 : vector<8x128xf32> to vector<1x1x8x128xf32>
    tpu.vector_store %arg4[%c0_24, %c2_25, %c0_26, %c0_27], %41 {strides = array<i32>} : memref<1x3x8x128xf32, #tpu.memory_space<vmem>>, vector<1x1x8x128xf32>,
    return
  }
  func.func @transform_0(%arg0: i32, %arg1: i32) -> (i32, i32) {
    %c1_i32 = arith.constant 1 : i32
    %0 = arith.muli %arg0, %c1_i32 : i32
    %1 = arith.addi %0, %arg1 : i32
    %c0_i32 = arith.constant 0 : i32
    %2 = arith.minsi %1, %c0_i32 : i32
    %c0_i32_0 = arith.constant 0 : i32
    %c0_i32_1 = arith.constant 0 : i32
    return %2, %c0_i32_0 : i32, i32
  }
  func.func @transform_1(%arg0: i32, %arg1: i32) -> (i32, i32) {
    %c1_i32 = arith.constant 1 : i32
    %0 = arith.muli %arg0, %c1_i32 : i32
    %1 = arith.addi %0, %arg1 : i32
    %c0_i32 = arith.constant 0 : i32
    %2 = arith.minsi %1, %c0_i32 : i32
    %c0_i32_0 = arith.constant 0 : i32
    %c0_i32_1 = arith.constant 0 : i32
    return %2, %c0_i32_0 : i32, i32
  }
  func.func @transform_2(%arg0: i32, %arg1: i32) -> (i32, i32, i32, i32) {
    %c0_i32 = arith.constant 0 : i32
    %c0_i32_0 = arith.constant 0 : i32
    %c0_i32_1 = arith.constant 0 : i32
    %c0_i32_2 = arith.constant 0 : i32
    return %arg0, %c0_i32, %c0_i32_0, %c0_i32_1 : i32, i32, i32, i32
  }
}

</mosaic_0001>

<llo_original>
// kernel: tpu_custom_call.1
$region0: #{tpu_custom_call.1}
  #allocation0 [shape = 'u32[]', space=smem, size = 0x4, offset = 0x4, fixed_abs, tag = 'smem constant byte address 0x4 - core index']
  #allocation1 [shape = 'u32[144,128]{1,0:T(1,128)}', space=vmem, size = 0x12000, scoped, tag = 'internal scratch']
  %s0 = inlined_call_operand.hbm [shape: f32[16,128], index: 0, kind: input, shape index: {}]
  %s1 = inlined_call_operand.hbm [shape: f32[16,128], index: 1, kind: input, shape index: {}]
  %s2 = inlined_call_operand.hbm [shape: f32[1,3,8,128], index: 2, kind: output, shape index: {}]
  %s3 = sld [smem:[#allocation0]]
  $region30: #{tpu_custom_call.1} parent=0
    _
  %s5 = ssub.s32 1, %s3
  %s6 = scalar_select 0, %s5, %s3
  $region1: #{tpu_custom_call.1} parent=0
    #allocation2 [shape = 'u8[8192]{0}', space=vmem, size = 0x2000, scoped, tag = 'input window, operand 0, single buffered']
    #allocation3 [shape = 's32[1]{0}', space=sflag, size = 0x4, scoped, tag = 'scoped memory for tpu_custom_call.1']
    #allocation4 [shape = 's32[1]{0}', space=sflag, size = 0x4, scoped, tag = 'scoped memory for tpu_custom_call.1']
    #allocation5 [shape = 'u8[8192]{0}', space=vmem, size = 0x2000, scoped, tag = 'input window, operand 1, single buffered']
    #allocation6 [shape = 's32[1]{0}', space=sflag, size = 0x4, scoped, tag = 'scoped memory for tpu_custom_call.1']
    #allocation7 [shape = 'u8[12288]{0}', space=vmem, size = 0x3000, scoped, tag = 'output window, operand 0, single buffered']
    %7 = vsyncpa [#allocation3], 0
    %8 = vsyncpa [#allocation6], 0
    %9 = vsyncpa [#allocation4], 0
    // Predicated region
    $region2: #{tpu_custom_call.1} parent=1 // pred_check
      _
    $region3: #{tpu_custom_call.1} parent=1 // pred_check_branch
      %11 = sbr.rel (0) target = $region5
    $region4: #{tpu_custom_call.1} parent=1 // pred_region
      %s12 = sadd.s32 0, 0
      %p13 = scmp.lt.s32.totalorder %s12, 0
      %s14 = scalar_select %p13, %s12, 0
      %s15 = smul.u32 2, %s14
      %s17 = ssub.s32 256, 256
      %18 = vsyncadd [#allocation3], %s17
      %s19 = smul.addr %s15, 128
      %s20 = scalar_lea.hbm %s0, %s19
      %s21 = sshll.u32 [#allocation2], 4
      %s22 = int_to_ptr.vmem [resolvable:$true] %s21
      %27 = dma.hbm_to_vmem [thread:$0]  %s20, 256, %s22, [#allocation3], 128, 128, 8
    $region5: #{tpu_custom_call.1} parent=1 // pred_fallthru
      _
    // Predicated region
    $region6: #{tpu_custom_call.1} parent=1 // pred_check
      _
    $region7: #{tpu_custom_call.1} parent=1 // pred_check_branch
      %29 = sbr.rel (0) target = $region9
    $region8: #{tpu_custom_call.1} parent=1 // pred_region
      %s30 = sadd.s32 0, 0
      %p31 = scmp.lt.s32.totalorder %s30, 0
      %s32 = scalar_select %p31, %s30, 0
      %s33 = smul.u32 2, %s32
      %s35 = ssub.s32 256, 256
      %36 = vsyncadd [#allocation6], %s35
      %s37 = smul.addr %s33, 128
      %s38 = scalar_lea.hbm %s1, %s37
      %s39 = sshll.u32 [#allocation5], 4
      %s40 = int_to_ptr.vmem [resolvable:$true] %s39
      %45 = dma.hbm_to_vmem [thread:$0]  %s38, 256, %s40, [#allocation6], 128, 128, 8
    $region9: #{tpu_custom_call.1} parent=1 // pred_fallthru
      _
    // Predicated region
    $region10: #{tpu_custom_call.1} parent=1 // pred_check
      _
    $region11: #{tpu_custom_call.1} parent=1 // pred_check_branch
      %47 = sbr.rel (0) target = $region13
    $region12: #{tpu_custom_call.1} parent=1 // pred_region
      %48 = dma.done [#allocation3], 256
    $region13: #{tpu_custom_call.1} parent=1 // pred_fallthru
      _
    // Predicated region
    $region14: #{tpu_custom_call.1} parent=1 // pred_check
      _
    $region15: #{tpu_custom_call.1} parent=1 // pred_check_branch
      %50 = sbr.rel (0) target = $region17
    $region16: #{tpu_custom_call.1} parent=1 // pred_region
      %51 = dma.done [#allocation6], 256
    $region17: #{tpu_custom_call.1} parent=1 // pred_fallthru
      _
    %s52 = sadd.s32 0, 0
    %p53 = scmp.lt.s32.totalorder %s52, 0
    %s54 = scalar_select %p53, %s52, 0
    %s55 = smul.u32 2, %s54
    %s56 = sadd.s32 0, 0
    %p57 = scmp.lt.s32.totalorder %s56, 0
    %s58 = scalar_select %p57, %s56, 0
    %s59 = smul.u32 2, %s58
    %p60 = scmp.eq.s32.totalorder 0, 0
    // Predicated region
    $region18: #{tpu_custom_call.1} parent=1 // pred_check
      %p61 = pneg %p60
    $region19: #{tpu_custom_call.1} parent=1 // pred_check_branch
      %63 = sbr.rel (%p61) target = $region21
    $region20: #{tpu_custom_call.1} parent=1 // pred_region
      %64 = vst [vmem:[#allocation7] sm:$0xff] 0.0
      %65 = vst [vmem:[#allocation7 + $0x8] sm:$0xff] 0.0
      %66 = vst [vmem:[#allocation7 + $0x10] sm:$0xff] 0.0
    $region21: #{tpu_custom_call.1} parent=1 // pred_fallthru
      _
    %v67 = vld [vmem:[#allocation2] sm:$0xff]
    %v68 = vld [vmem:[#allocation5] sm:$0xff]
    %v69 = vmul.f32 %v67, %v68
    %v70 = vadd.f32 %v69, 0.0
    %v71 = vadd.f32 %v67, 0.0
    %v72 = vadd.f32 %v68, 0.0
    %s73 = scalar_lea.vmem [#allocation2], 8
    %v74 = vld [vmem:[%s73] sm:$0xff]
    %s75 = scalar_lea.vmem [#allocation5], 8
    %v76 = vld [vmem:[%s75] sm:$0xff]
    %v77 = vmul.f32 %v74, %v76
    %v78 = vadd.f32 %v70, %v77
    %v79 = vadd.f32 %v71, %v74
    %v80 = vadd.f32 %v72, %v76
    %v81 = vld [vmem:[#allocation7] sm:$0xff]
    %v82 = vadd.f32 %v81, %v78
    %83 = vst [vmem:[#allocation7] sm:$0xff] %v82
    %s84 = scalar_lea.vmem [#allocation7], 8
    %v85 = vld [vmem:[%s84] sm:$0xff]
    %v86 = vadd.f32 %v85, %v79
    %87 = vst [vmem:[%s84] sm:$0xff] %v86
    %s88 = scalar_lea.vmem [#allocation7], 16
    %v89 = vld [vmem:[%s88] sm:$0xff]
    %v90 = vadd.f32 %v89, %v80
    %91 = vst [vmem:[%s88] sm:$0xff] %v90
    // Predicated region
    $region22: #{tpu_custom_call.1} parent=1 // pred_check
      _
    $region23: #{tpu_custom_call.1} parent=1 // pred_check_branch
      %93 = sbr.rel (0) target = $region25
    $region24: #{tpu_custom_call.1} parent=1 // pred_region
      %s95 = ssub.s32 384, 384
      %96 = vsyncadd [#allocation4], %s95
      %s97 = sshll.u32 [#allocation7], 4
      %s98 = int_to_ptr.vmem [resolvable:$true] %s97
      %103 = dma.vmem_to_hbm [thread:$0]  %s98, 384, %s2, [#allocation4], 128, 128, 8
    $region25: #{tpu_custom_call.1} parent=1 // pred_fallthru
      _
    // Predicated region
    $region26: #{tpu_custom_call.1} parent=1 // pred_check
      _
    $region27: #{tpu_custom_call.1} parent=1 // pred_check_branch
      %105 = sbr.rel (0) target = $region29
    $region28: #{tpu_custom_call.1} parent=1 // pred_region
      %106 = dma.done [#allocation4], 384
    $region29: #{tpu_custom_call.1} parent=1 // pred_fallthru
      _
    %107 = vsyncpa [#allocation3], 1
    %108 = vsyncpa [#allocation6], 1
    %109 = vsyncpa [#allocation4], 1

</llo_original>
